<compile_context>
chip_gen: v7x
topology: tpu7x:2x2x1
jax: 0.10.0
libtpu: 0.0.40
codegen_flags: <defaults>
</compile_context>

<pallas_src>
import functools

import jax
import jax.numpy as jnp
from jax import lax
from jax.experimental import pallas as pl
from jax.experimental.pallas import tpu as pltpu

LANE = 128
SUB = 8
MAX_BLOCK_ROWS = 1024   # 1024 x 128 x f32 = 512 KiB per input block (x2 inputs x2 bufs = 2 MiB)


def _int_pow(x, k):
    if k == 0:
        return jnp.ones_like(x)
    out = x
    for _ in range(k - 1):
        out = out * x
    return out


def _mcc_focal_partial_kernel(p_ref, t_ref, out_ref, *,
                              gamma, delta, smooth, n_elems, block_rows,
                              needs_mask):
    p = p_ref[...].astype(jnp.float32)
    t = t_ref[...].astype(jnp.float32)

    if needs_mask:
        # Only emitted when the grid over-covers the true element count
        # (ragged last block / element padding).  Zeros out invalid lanes so
        # both the confusion sums and the focal sum are exact.
        i = pl.program_id(0)
        row = lax.broadcasted_iota(jnp.int32, (block_rows, LANE), 0)
        col = lax.broadcasted_iota(jnp.int32, (block_rows, LANE), 1)
        flat = i * (block_rows * LANE) + row * LANE + col
        valid = flat < n_elems
        p = jnp.where(valid, p, 0.0)
        t = jnp.where(valid, t, 0.0)

    pt = p * t

    # Alpha-balanced focal term; gamma specialized to integer powers so only
    # the two logs use the EUP (jnp.power with a float exponent would add
    # exp/log pairs per element and flip the kernel to EUP-bound on v7x).
    pc = jnp.clip(p, smooth, 1.0 - smooth)
    omp = 1.0 - pc
    g = float(gamma)
    if g.is_integer() and 0 <= int(g) <= 4:
        w_pos = _int_pow(omp, int(g))
        w_neg = _int_pow(pc, int(g))
    else:
        w_pos = jnp.power(omp, g)
        w_neg = jnp.power(pc, g)
    focal = -(delta * t * w_pos * jnp.log(pc)
              + (1.0 - delta) * (1.0 - t) * w_neg * jnp.log(omp))
    if needs_mask:
        focal = jnp.where(valid, focal, 0.0)

    def part(x):
        # Fold the whole block into one (8, 128) partial: leading-axis sum is
        # pure VALU vreg adds; exactly 4 stores per block.
        return jnp.sum(x.reshape(-1, SUB, LANE), axis=0)

    out_ref[0, 0] = part(p)       # sum(p)    -> TP + FP
    out_ref[0, 1] = part(t)       # sum(t)    -> TP + FN
    out_ref[0, 2] = part(pt)      # sum(p*t)  -> TP
    out_ref[0, 3] = part(focal)   # sum(focal)


def mcc_focal_loss(outputs, targets, *, mcc_weight=1.0, focal_weight=1.0,
                   gamma=2.0, delta=0.25, smooth=1e-6):
    p = outputs.reshape(-1)
    t = targets.reshape(-1)
    n = p.shape[0]

    tile = SUB * LANE
    n_pad = pl.cdiv(n, tile) * tile
    pad = n_pad - n
    if pad:
        # TODO(synk): only hit when numel is not a multiple of 1024; the pad
        # costs a full-array HBM copy.  Typical segmentation shapes avoid it.
        p = jnp.pad(p, (0, pad))
        t = jnp.pad(t, (0, pad))

    rows = n_pad // LANE                       # multiple of 8
    block_rows = min(MAX_BLOCK_ROWS, rows)     # multiple of 8, <= rows
    grid = pl.cdiv(rows, block_rows)
    covered = grid * block_rows * LANE
    needs_mask = covered != n                  # static (shape-derived) decision

    p2 = p.reshape(rows, LANE)
    t2 = t.reshape(rows, LANE)

    kernel = functools.partial(
        _mcc_focal_partial_kernel,
        gamma=gamma, delta=delta, smooth=smooth,
        n_elems=n, block_rows=block_rows, needs_mask=needs_mask)

    in_spec = pl.BlockSpec((block_rows, LANE), lambda i: (i, 0))
    partials = pl.pallas_call(
        kernel,
        out_shape=jax.ShapeDtypeStruct((grid, 4, SUB, LANE), jnp.float32),
        grid=(grid,),
        in_specs=[in_spec, in_spec],
        out_specs=pl.BlockSpec((1, 4, SUB, LANE), lambda i: (i, 0, 0, 0)),
        compiler_params=pltpu.CompilerParams(
            dimension_semantics=("parallel",)),
    )(p2, t2)

    # Tiny finalize on the (grid, 4, 8, 128) partials in plain JAX.
    sums = jnp.sum(partials, axis=(0, 2, 3))   # (4,)
    sp, st, tp, sf = sums[0], sums[1], sums[2], sums[3]
    nf = jnp.float32(n)
    fp = sp - tp
    fn = st - tp
    tn = nf - sp - st + tp
    mcc = (tp * tn - fp * fn) / jnp.sqrt(
        (tp + fp) * (tp + fn) * (tn + fp) * (tn + fn) + jnp.float32(smooth))
    focal_idx = sf / nf
    return (mcc_weight * (1.0 - mcc) + focal_weight * focal_idx) * 0.5


def _reference(outputs, targets, *, mcc_weight=1.0, focal_weight=1.0,
               gamma=2.0, delta=0.25, smooth=1e-6):
    p = outputs.reshape(-1).astype(jnp.float32)
    t = targets.reshape(-1).astype(jnp.float32)
    tp = jnp.sum(p * t)
    tn = jnp.sum((1 - p) * (1 - t))
    fp = jnp.sum(p * (1 - t))
    fn = jnp.sum((1 - p) * t)
    mcc = (tp * tn - fp * fn) / jnp.sqrt(
        (tp + fp) * (tp + fn) * (tn + fp) * (tn + fn) + smooth)
    pc = jnp.clip(p, smooth, 1.0 - smooth)
    focal = -(delta * t * (1 - pc) ** gamma * jnp.log(pc)
              + (1 - delta) * (1 - t) * pc ** gamma * jnp.log(1 - pc))
    return (mcc_weight * (1 - mcc) + focal_weight * jnp.mean(focal)) / 2


if __name__ == "__main__":
    key = jax.random.PRNGKey(0)
    k1, k2 = jax.random.split(key)
    # Segmentation-style inputs: predicted probabilities and binary targets, NCHW.
    logits = jax.random.normal(k1, (2, 4, 16, 16), jnp.float32)
    outputs = jax.nn.sigmoid(logits)
    targets = (jax.random.uniform(k2, (2, 4, 16, 16)) > 0.7).astype(jnp.float32)

    loss = mcc_focal_loss(outputs, targets)
    loss = jax.block_until_ready(loss)

    ref = _reference(outputs, targets)
    assert jnp.allclose(loss, ref, rtol=1e-5, atol=1e-6), (loss, ref)
    print("KERNEL_OK")
</pallas_src>

<mosaic_0001>
module attributes {stable_mosaic.version = 11 : i64} {
  func.func @_mcc_focal_partial_kernel(%arg0: i32, %arg1: memref<16x128xf32, #tpu.memory_space<vmem>>, %arg2: memref<16x128xf32, #tpu.memory_space<vmem>>, %arg3: memref<1x4x8x128xf32, #tpu.memory_space<vmem>>) attributes {dimension_semantics = [#tpu.dimension_semantics<parallel>], iteration_bounds = array<i64: 1>, scalar_prefetch = 0 : i64, scratch_operands = 0 : i64, tpu.core_type = #tpu.core_type<tc>, window_params = [{transform_indices = @transform_0, window_bounds = array<i64: 16, 128>}, {transform_indices = @transform_1, window_bounds = array<i64: 16, 128>}, {transform_indices = @transform_2, window_bounds = array<i64: 1, 4, 8, 128>}]} {
    %c0 = arith.constant 0 : index
    %c0_0 = arith.constant 0 : index
    %0 = vector.load %arg1[%c0, %c0_0] : memref<16x128xf32, #tpu.memory_space<vmem>>, vector<16x128xf32>
    %c0_1 = arith.constant 0 : index
    %c0_2 = arith.constant 0 : index
    %1 = vector.load %arg2[%c0_1, %c0_2] : memref<16x128xf32, #tpu.memory_space<vmem>>, vector<16x128xf32>
    %2 = arith.mulf %0, %1 : vector<16x128xf32>
    %cst = arith.constant 9.99999997E-7 : f32
    %cst_3 = arith.constant 0.999998986 : f32
    %3 = vector.broadcast %cst : f32 to vector<16x128xf32>
    %4 = arith.maximumf %3, %0 : vector<16x128xf32>
    %5 = vector.broadcast %cst_3 : f32 to vector<16x128xf32>
    %6 = arith.minimumf %5, %4 : vector<16x128xf32>
    %cst_4 = arith.constant 1.000000e+00 : f32
    %7 = vector.broadcast %cst_4 : f32 to vector<16x128xf32>
    %8 = arith.subf %7, %6 : vector<16x128xf32>
    %9 = arith.mulf %8, %8 : vector<16x128xf32>
    %10 = arith.mulf %6, %6 : vector<16x128xf32>
    %cst_5 = arith.constant 2.500000e-01 : f32
    %11 = vector.broadcast %cst_5 : f32 to vector<16x128xf32>
    %12 = arith.mulf %11, %1 : vector<16x128xf32>
    %13 = arith.mulf %12, %9 : vector<16x128xf32>
    %14 = math.log %6 : vector<16x128xf32>
    %15 = arith.mulf %13, %14 : vector<16x128xf32>
    %cst_6 = arith.constant 1.000000e+00 : f32
    %16 = vector.broadcast %cst_6 : f32 to vector<16x128xf32>
    %17 = arith.subf %16, %1 : vector<16x128xf32>
    %cst_7 = arith.constant 7.500000e-01 : f32
    %18 = vector.broadcast %cst_7 : f32 to vector<16x128xf32>
    %19 = arith.mulf %18, %17 : vector<16x128xf32>
    %20 = arith.mulf %19, %10 : vector<16x128xf32>
    %21 = math.log %8 : vector<16x128xf32>
    %22 = arith.mulf %20, %21 : vector<16x128xf32>
    %23 = arith.addf %15, %22 : vector<16x128xf32>
    %cst_8 = arith.constant 0.000000e+00 : f32
    %24 = vector.broadcast %cst_8 : f32 to vector<16x128xf32>
    %25 = arith.subf %24, %23 : vector<16x128xf32>
    %26 = vector.shape_cast %0 : vector<16x128xf32> to vector<2x8x128xf32>
    %cst_9 = arith.constant dense<0.000000e+00> : vector<8x128xf32>
    %27 = vector.multi_reduction <add>, %26, %cst_9 [0] : vector<2x8x128xf32> to vector<8x128xf32>
    %c0_10 = arith.constant 0 : index
    %c0_11 = arith.constant 0 : index
    %c0_12 = arith.constant 0 : index
    %c0_13 = arith.constant 0 : index
    %28 = vector.load %arg3[%c0_10, %c0_11, %c0_12, %c0_13] : memref<1x4x8x128xf32, #tpu.memory_space<vmem>>, vector<1x1x8x128xf32>
    %29 = vector.shape_cast %28 : vector<1x1x8x128xf32> to vector<8x128xf32>
    %30 = vector.shape_cast %27 : vector<8x128xf32> to vector<1x1x8x128xf32>
    tpu.vector_store %arg3[%c0_10, %c0_11, %c0_12, %c0_13], %30 {strides = array<i32>} : memref<1x4x8x128xf32, #tpu.memory_space<vmem>>, vector<1x1x8x128xf32>,
    %31 = vector.shape_cast %1 : vector<16x128xf32> to vector<2x8x128xf32>
    %cst_14 = arith.constant dense<0.000000e+00> : vector<8x128xf32>
    %32 = vector.multi_reduction <add>, %31, %cst_14 [0] : vector<2x8x128xf32> to vector<8x128xf32>
    %c0_15 = arith.constant 0 : index
    %c1 = arith.constant 1 : index
    %c0_16 = arith.constant 0 : index
    %c0_17 = arith.constant 0 : index
    %33 = vector.load %arg3[%c0_15, %c1, %c0_16, %c0_17] : memref<1x4x8x128xf32, #tpu.memory_space<vmem>>, vector<1x1x8x128xf32>
    %34 = vector.shape_cast %33 : vector<1x1x8x128xf32> to vector<8x128xf32>
    %35 = vector.shape_cast %32 : vector<8x128xf32> to vector<1x1x8x128xf32>
    tpu.vector_store %arg3[%c0_15, %c1, %c0_16, %c0_17], %35 {strides = array<i32>} : memref<1x4x8x128xf32, #tpu.memory_space<vmem>>, vector<1x1x8x128xf32>,
    %36 = vector.shape_cast %2 : vector<16x128xf32> to vector<2x8x128xf32>
    %cst_18 = arith.constant dense<0.000000e+00> : vector<8x128xf32>
    %37 = vector.multi_reduction <add>, %36, %cst_18 [0] : vector<2x8x128xf32> to vector<8x128xf32>
    %c0_19 = arith.constant 0 : index
    %c2 = arith.constant 2 : index
    %c0_20 = arith.constant 0 : index
    %c0_21 = arith.constant 0 : index
    %38 = vector.load %arg3[%c0_19, %c2, %c0_20, %c0_21] : memref<1x4x8x128xf32, #tpu.memory_space<vmem>>, vector<1x1x8x128xf32>
    %39 = vector.shape_cast %38 : vector<1x1x8x128xf32> to vector<8x128xf32>
    %40 = vector.shape_cast %37 : vector<8x128xf32> to vector<1x1x8x128xf32>
    tpu.vector_store %arg3[%c0_19, %c2, %c0_20, %c0_21], %40 {strides = array<i32>} : memref<1x4x8x128xf32, #tpu.memory_space<vmem>>, vector<1x1x8x128xf32>,
    %41 = vector.shape_cast %25 : vector<16x128xf32> to vector<2x8x128xf32>
    %cst_22 = arith.constant dense<0.000000e+00> : vector<8x128xf32>
    %42 = vector.multi_reduction <add>, %41, %cst_22 [0] : vector<2x8x128xf32> to vector<8x128xf32>
    %c0_23 = arith.constant 0 : index
    %c3 = arith.constant 3 : index
    %c0_24 = arith.constant 0 : index
    %c0_25 = arith.constant 0 : index
    %43 = vector.load %arg3[%c0_23, %c3, %c0_24, %c0_25] : memref<1x4x8x128xf32, #tpu.memory_space<vmem>>, vector<1x1x8x128xf32>
    %44 = vector.shape_cast %43 : vector<1x1x8x128xf32> to vector<8x128xf32>
    %45 = vector.shape_cast %42 : vector<8x128xf32> to vector<1x1x8x128xf32>
    tpu.vector_store %arg3[%c0_23, %c3, %c0_24, %c0_25], %45 {strides = array<i32>} : memref<1x4x8x128xf32, #tpu.memory_space<vmem>>, vector<1x1x8x128xf32>,
    return
  }
  func.func @transform_0(%arg0: i32) -> (i32, i32) {
    %c0_i32 = arith.constant 0 : i32
    %c0_i32_0 = arith.constant 0 : i32
    return %arg0, %c0_i32 : i32, i32
  }
  func.func @transform_1(%arg0: i32) -> (i32, i32) {
    %c0_i32 = arith.constant 0 : i32
    %c0_i32_0 = arith.constant 0 : i32
    return %arg0, %c0_i32 : i32, i32
  }
  func.func @transform_2(%arg0: i32) -> (i32, i32, i32, i32) {
    %c0_i32 = arith.constant 0 : i32
    %c0_i32_0 = arith.constant 0 : i32
    %c0_i32_1 = arith.constant 0 : i32
    %c0_i32_2 = arith.constant 0 : i32
    return %arg0, %c0_i32, %c0_i32_0, %c0_i32_1 : i32, i32, i32, i32
  }
}

</mosaic_0001>

<llo_original>
// kernel: tpu_custom_call.1
$region0: #{tpu_custom_call.1}
  #allocation0 [shape = 'u32[]', space=smem, size = 0x4, offset = 0x4, fixed_abs, tag = 'smem constant byte address 0x4 - core index']
  #allocation1 [shape = 'u32[144,128]{1,0:T(1,128)}', space=vmem, size = 0x12000, scoped, tag = 'internal scratch']
  %s0 = inlined_call_operand.hbm [shape: f32[16,128], index: 0, kind: input, shape index: {}]
  %s1 = inlined_call_operand.hbm [shape: f32[16,128], index: 1, kind: input, shape index: {}]
  %s2 = inlined_call_operand.hbm [shape: f32[1,4,8,128], index: 2, kind: output, shape index: {}]
  %s3 = sld [smem:[#allocation0]]
  $region26: #{tpu_custom_call.1} parent=0
    _
  %s5 = ssub.s32 1, %s3
  %s6 = scalar_select 0, %s5, %s3
  $region1: #{tpu_custom_call.1} parent=0
    #allocation2 [shape = 'u8[8192]{0}', space=vmem, size = 0x2000, scoped, tag = 'input window, operand 0, single buffered']
    #allocation3 [shape = 's32[1]{0}', space=sflag, size = 0x4, scoped, tag = 'scoped memory for tpu_custom_call.1']
    #allocation4 [shape = 's32[1]{0}', space=sflag, size = 0x4, scoped, tag = 'scoped memory for tpu_custom_call.1']
    #allocation5 [shape = 'u8[8192]{0}', space=vmem, size = 0x2000, scoped, tag = 'input window, operand 1, single buffered']
    #allocation6 [shape = 's32[1]{0}', space=sflag, size = 0x4, scoped, tag = 'scoped memory for tpu_custom_call.1']
    #allocation7 [shape = 'u8[16384]{0}', space=vmem, size = 0x4000, scoped, tag = 'output window, operand 0, single buffered']
    %7 = vsyncpa [#allocation3], 0
    %8 = vsyncpa [#allocation6], 0
    %9 = vsyncpa [#allocation4], 0
    // Predicated region
    $region2: #{tpu_custom_call.1} parent=1 // pred_check
      _
    $region3: #{tpu_custom_call.1} parent=1 // pred_check_branch
      %11 = sbr.rel (0) target = $region5
    $region4: #{tpu_custom_call.1} parent=1 // pred_region
      %s13 = ssub.s32 256, 256
      %14 = vsyncadd [#allocation3], %s13
      %s15 = sshll.u32 [#allocation2], 4
      %s16 = int_to_ptr.vmem [resolvable:$true] %s15
      %21 = dma.hbm_to_vmem [thread:$0]  %s0, 256, %s16, [#allocation3], 128, 128, 8
    $region5: #{tpu_custom_call.1} parent=1 // pred_fallthru
      _
    // Predicated region
    $region6: #{tpu_custom_call.1} parent=1 // pred_check
      _
    $region7: #{tpu_custom_call.1} parent=1 // pred_check_branch
      %23 = sbr.rel (0) target = $region9
    $region8: #{tpu_custom_call.1} parent=1 // pred_region
      %s25 = ssub.s32 256, 256
      %26 = vsyncadd [#allocation6], %s25
      %s27 = sshll.u32 [#allocation5], 4
      %s28 = int_to_ptr.vmem [resolvable:$true] %s27
      %33 = dma.hbm_to_vmem [thread:$0]  %s1, 256, %s28, [#allocation6], 128, 128, 8
    $region9: #{tpu_custom_call.1} parent=1 // pred_fallthru
      _
    // Predicated region
    $region10: #{tpu_custom_call.1} parent=1 // pred_check
      _
    $region11: #{tpu_custom_call.1} parent=1 // pred_check_branch
      %35 = sbr.rel (0) target = $region13
    $region12: #{tpu_custom_call.1} parent=1 // pred_region
      %36 = dma.done [#allocation3], 256
    $region13: #{tpu_custom_call.1} parent=1 // pred_fallthru
      _
    // Predicated region
    $region14: #{tpu_custom_call.1} parent=1 // pred_check
      _
    $region15: #{tpu_custom_call.1} parent=1 // pred_check_branch
      %38 = sbr.rel (0) target = $region17
    $region16: #{tpu_custom_call.1} parent=1 // pred_region
      %39 = dma.done [#allocation6], 256
    $region17: #{tpu_custom_call.1} parent=1 // pred_fallthru
      _
    %v40 = vld [vmem:[#allocation2] sm:$0xff]
    %v41 = vld [vmem:[#allocation2 + $0x8] sm:$0xff]
    %v42 = vld [vmem:[#allocation5] sm:$0xff]
    %v43 = vld [vmem:[#allocation5 + $0x8] sm:$0xff]
    %v44 = vmul.f32 %v40, %v42
    %v45 = vmul.f32 %v41, %v43
    %v46 = vmax.f32 %v40, 1e-06
    %v47 = vmax.f32 %v41, 1e-06
    %v48 = vmin.f32 %v46, 0.999999
    %v49 = vmin.f32 %v47, 0.999999
    %v50 = vsub.f32 1.0, %v48
    %v51 = vsub.f32 1.0, %v49
    %v52 = vmul.f32 %v50, %v50
    %v53 = vmul.f32 %v51, %v51
    %v54 = vmul.f32 %v48, %v48
    %v55 = vmul.f32 %v49, %v49
    %v56 = vmul.f32 %v42, 0.25
    %v57 = vmul.f32 %v43, 0.25
    %v58 = vmul.f32 %v56, %v52
    %v59 = vmul.f32 %v57, %v53
    %v60 = vlog2.pop %v48
    %v61 = vmul.f32 %v60, 0.6931472
    %v62 = vlog2.pop %v49
    %v63 = vmul.f32 %v62, 0.6931472
    %v64 = vmul.f32 %v58, %v61
    %v65 = vmul.f32 %v59, %v63
    %v66 = vsub.f32 1.0, %v42
    %v67 = vsub.f32 1.0, %v43
    %v68 = vmul.f32 %v66, 0.75
    %v69 = vmul.f32 %v67, 0.75
    %v70 = vmul.f32 %v68, %v54
    %v71 = vmul.f32 %v69, %v55
    %v72 = vlog2.pop %v50
    %v73 = vmul.f32 %v72, 0.6931472
    %v74 = vlog2.pop %v51
    %v75 = vmul.f32 %v74, 0.6931472
    %v76 = vmul.f32 %v70, %v73
    %v77 = vmul.f32 %v71, %v75
    %v78 = vadd.f32 %v64, %v76
    %v79 = vadd.f32 %v65, %v77
    %v80 = vsub.f32 0.0, %v78
    %v81 = vsub.f32 0.0, %v79
    %v82 = vadd.f32 %v40, %v41
    %83 = vst [vmem:[#allocation7] sm:$0xff] %v82
    %v84 = vadd.f32 %v42, %v43
    %s85 = scalar_lea.vmem [#allocation7], 8
    %86 = vst [vmem:[%s85] sm:$0xff] %v84
    %v87 = vadd.f32 %v44, %v45
    %s88 = scalar_lea.vmem [#allocation7], 16
    %89 = vst [vmem:[%s88] sm:$0xff] %v87
    %v90 = vadd.f32 %v80, %v81
    %s91 = scalar_lea.vmem [#allocation7], 24
    %92 = vst [vmem:[%s91] sm:$0xff] %v90
    // Predicated region
    $region18: #{tpu_custom_call.1} parent=1 // pred_check
      _
    $region19: #{tpu_custom_call.1} parent=1 // pred_check_branch
      %94 = sbr.rel (0) target = $region21
    $region20: #{tpu_custom_call.1} parent=1 // pred_region
      %s96 = ssub.s32 512, 512
      %97 = vsyncadd [#allocation4], %s96
      %s98 = sshll.u32 [#allocation7], 4
      %s99 = int_to_ptr.vmem [resolvable:$true] %s98
      %104 = dma.vmem_to_hbm [thread:$0]  %s99, 512, %s2, [#allocation4], 128, 128, 8
    $region21: #{tpu_custom_call.1} parent=1 // pred_fallthru
      _
    // Predicated region
    $region22: #{tpu_custom_call.1} parent=1 // pred_check
      _
    $region23: #{tpu_custom_call.1} parent=1 // pred_check_branch
      %106 = sbr.rel (0) target = $region25
    $region24: #{tpu_custom_call.1} parent=1 // pred_region
      %107 = dma.done [#allocation4], 512
    $region25: #{tpu_custom_call.1} parent=1 // pred_fallthru
      _
    %108 = vsyncpa [#allocation3], 1
    %109 = vsyncpa [#allocation6], 1
    %110 = vsyncpa [#allocation4], 1

</llo_original>
